<compile_context>
chip_gen: v7x
topology: tpu7x:2x2x1
jax: 0.10.0
libtpu: 0.0.40
codegen_flags: <defaults>
</compile_context>

<pallas_src>
import jax
import jax.numpy as jnp
from jax import lax
from jax.experimental import pallas as pl
from jax.experimental.pallas import tpu as pltpu

# ---- model sizes consistent with the module --------------------------------------
EMBED = 32           # embedding_dim
HID = 32             # time_hidden_dim
HHALF = HID // 2     # per-direction LSTM hidden size (16)
ACTIONS = 8          # action_size
BATCH = 2            # batch_size
SEQ = 8              # sequence length
BPAD = 8             # batch padded to one full sublane group (rows BATCH..7 are zero)

GATEW = 2 * HHALF    # 32: per-gate width in the fused (left|right) layout
FUSED = 4 * GATEW    # 128: fused gate vector width (lane-dense)


# ---- fused LSTM cell (left & right directions packed side by side) ----------------
def _lstm_cell_fused(g, c_prev):
    """g: (BPAD, 128) fused gates laid out [i_l,i_r, f_l,f_r, g_l,g_r, o_l,o_r].
    c_prev: (BPAD, 32) = [c_left | c_right], or None for a zero initial cell state.
    All elementwise math in f32 (v5e-safe)."""
    sig = jax.nn.sigmoid(g)                    # one full-width EUP pass
    i_g = sig[:, 0 * GATEW:1 * GATEW]          # offset 0: free
    o_g = sig[:, 3 * GATEW:4 * GATEW]
    g_c = jnp.tanh(g[:, 2 * GATEW:3 * GATEW])
    if c_prev is None:
        c_new = i_g * g_c                      # f * 0 dropped
    else:
        f_g = sig[:, 1 * GATEW:2 * GATEW]
        c_new = f_g * c_prev + i_g * g_c
    h_new = o_g * jnp.tanh(c_new)
    return h_new, c_new


# ---- Pallas kernel -----------------------------------------------------------------
def time_detector_kernel(x_ref, w_in_ref, b_in_ref, w_hh_ref,
                         w_fc_f_ref, w_fc_b_ref, b_fc_ref, out_ref):
    # (1) Hoisted input projection: forward gates for all T steps + backward-direction
    #     gates, one bf16 MXU matmul with f32 accumulation.  x: (T*BPAD, 2E) bf16;
    #     w_in: (2E, 256) bf16; bias broadcast-add is prologue (off the serial path).
    proj = (jnp.dot(x_ref[...], w_in_ref[...], preferred_element_type=jnp.float32)
            + b_in_ref[...])                                          # (T*BPAD, 256) f32

    # (2) Backward-direction output at the last position == backward cell's FIRST step
    #     on x[T-1] with zero (h, c).  Slice is vreg-aligned: rows 56:64, lanes 128:256.
    h_bwd, _ = _lstm_cell_fused(
        proj[(SEQ - 1) * BPAD:SEQ * BPAD, FUSED:2 * FUSED], None)     # (BPAD, 32)

    # (3) Fused left+right forward recurrence (block-diagonal W_hh), fully unrolled.
    #     Per-step slices are aligned to 8 sublanes x 128 lanes -> no XLU shuffles.
    w_hh = w_hh_ref[...]                                              # (32, 128) bf16
    h, c = _lstm_cell_fused(proj[0:BPAD, 0:FUSED], None)              # t = 0 (h0 = 0)
    for t in range(1, SEQ):
        g = (proj[t * BPAD:(t + 1) * BPAD, 0:FUSED]
             + jnp.dot(h.astype(jnp.bfloat16), w_hh,
                       preferred_element_type=jnp.float32))
        h, c = _lstm_cell_fused(g, c)

    # (4) Dropout = identity (eval); split-FC (no lane concat) -> log_softmax.
    logits = (jnp.dot(h.astype(jnp.bfloat16), w_fc_f_ref[...],
                      preferred_element_type=jnp.float32)
              + jnp.dot(h_bwd.astype(jnp.bfloat16), w_fc_b_ref[...],
                        preferred_element_type=jnp.float32)
              + b_fc_ref[...])                                        # (BPAD, A)
    z = logits - jnp.max(logits, axis=1, keepdims=True)
    out_ref[...] = z - jnp.log(jnp.sum(jnp.exp(z), axis=1, keepdims=True))


# ---- wrapper-side weight packing (runs ONCE, outside the hot path) -----------------
def _scatter_gates(w_left, w_right):
    """w_left: (d_l, 4*HHALF), w_right: (d_r, 4*HHALF), PyTorch gate order i,f,g,o.
    Returns (d_l + d_r, 128) block-diagonal matrix in the fused gate layout
    [i_l,i_r, f_l,f_r, g_l,g_r, o_l,o_r]."""
    d_l, d_r = w_left.shape[0], w_right.shape[0]
    out = jnp.zeros((d_l + d_r, FUSED), jnp.float32)
    for gi in range(4):
        out = out.at[:d_l, gi * GATEW:gi * GATEW + HHALF].set(
            w_left[:, gi * HHALF:(gi + 1) * HHALF])
        out = out.at[d_l:, gi * GATEW + HHALF:(gi + 1) * GATEW].set(
            w_right[:, gi * HHALF:(gi + 1) * HHALF])
    return out


def _scatter_bias(b_left, b_right):
    """(4*HHALF,) x2 -> (128,) in the fused gate layout."""
    out = jnp.zeros((FUSED,), jnp.float32)
    for gi in range(4):
        out = out.at[gi * GATEW:gi * GATEW + HHALF].set(
            b_left[gi * HHALF:(gi + 1) * HHALF])
        out = out.at[gi * GATEW + HHALF:(gi + 1) * GATEW].set(
            b_right[gi * HHALF:(gi + 1) * HHALF])
    return out


def pack_params(params):
    """Consolidate the 14 PyTorch-style tensors into 6 kernel arrays.
    MXU operands in bf16; biases stay f32 (added post-accumulation)."""
    dirs, w_fc, b_fc = params
    (wih_lf, whh_lf, b_lf), (wih_lb, whh_lb, b_lb), \
        (wih_rf, whh_rf, b_rf), (wih_rb, whh_rb, b_rb) = dirs

    # Input-projection block: rows = [left_embed(E); right_embed(E)],
    # cols = [fwd fused gates (128) | bwd fused gates (128)].
    w_in_fwd = _scatter_gates(wih_lf.T, wih_rf.T)                     # (2E, 128)
    w_in_bwd = _scatter_gates(wih_lb.T, wih_rb.T)                     # (2E, 128)
    w_in = jnp.concatenate([w_in_fwd, w_in_bwd], axis=1)              # (2E, 256)
    b_in = jnp.concatenate([_scatter_bias(b_lf, b_rf),
                            _scatter_bias(b_lb, b_rb)]).reshape(1, 2 * FUSED)

    # Forward recurrence block-diagonal: rows = [h_left(16); h_right(16)].
    w_hh = _scatter_gates(whh_lf.T, whh_rf.T)                         # (32, 128)

    # FC weight split: kernel fwd features [l_fwd, r_fwd], bwd features [l_bwd, r_bwd];
    # PyTorch input order is [l_fwd, l_bwd, r_fwd, r_bwd] -> gather rows of w_fc.T.
    w_fc_t = w_fc.T                                                   # (64, A)
    w_fc_f = jnp.concatenate([w_fc_t[0:HHALF],                        # l_fwd
                              w_fc_t[2 * HHALF:3 * HHALF]], axis=0)   # r_fwd -> (32, A)
    w_fc_b = jnp.concatenate([w_fc_t[HHALF:2 * HHALF],                # l_bwd
                              w_fc_t[3 * HHALF:4 * HHALF]], axis=0)   # r_bwd -> (32, A)

    return (w_in.astype(jnp.bfloat16), b_in, w_hh.astype(jnp.bfloat16),
            w_fc_f.astype(jnp.bfloat16), w_fc_b.astype(jnp.bfloat16),
            b_fc.reshape(1, ACTIONS))


# ---- forward wrapper ---------------------------------------------------------------
def time_detector_forward(left_embeds, right_embeds, packed):
    """left_embeds / right_embeds: (B, T, E) batch-first, like the PyTorch module."""
    w_in, b_in, w_hh, w_fc_f, w_fc_b, b_fc = packed
    # Pack both sequences: (B, T, E) x2 -> time-major, batch padded to 8 sublanes,
    # flattened to (T*BPAD, 2E) so every per-step slice in the kernel is vreg-aligned.
    x = jnp.concatenate([left_embeds, right_embeds], axis=-1)         # (B, T, 2E)
    x = jnp.transpose(x, (1, 0, 2))                                   # (T, B, 2E)
    x = jnp.pad(x, ((0, 0), (0, BPAD - BATCH), (0, 0)))               # (T, BPAD, 2E)
    x = x.reshape(SEQ * BPAD, 2 * EMBED).astype(jnp.bfloat16)

    inputs = (x, w_in, b_in, w_hh, w_fc_f, w_fc_b, b_fc)
    out_full = pl.pallas_call(
        time_detector_kernel,
        out_shape=jax.ShapeDtypeStruct((BPAD, ACTIONS), jnp.float32),
        in_specs=[pl.BlockSpec(memory_space=pltpu.MemorySpace.VMEM)] * len(inputs),
        out_specs=pl.BlockSpec(memory_space=pltpu.MemorySpace.VMEM),
        cost_estimate=pl.CostEstimate(flops=2_600_000,
                                      transcendentals=12_288,
                                      bytes_accessed=60_000),
    )(*inputs)
    return out_full[:BATCH]                                           # drop pad rows


# ---- deterministic parameter construction (PyTorch-like uniform init) --------------
def make_params(key):
    k = 1.0 / jnp.sqrt(jnp.float32(HHALF))

    def uni(key, shape, scale):
        return jax.random.uniform(key, shape, jnp.float32, minval=-scale, maxval=scale)

    keys = jax.random.split(key, 4 * 4 + 2)
    dirs = []
    ki = 0
    for _direction in range(4):  # left-fwd, left-bwd, right-fwd, right-bwd
        w_ih = uni(keys[ki], (4 * HHALF, EMBED), k); ki += 1
        w_hh = uni(keys[ki], (4 * HHALF, HHALF), k); ki += 1
        b_ih = uni(keys[ki], (4 * HHALF,), k);       ki += 1
        b_hh = uni(keys[ki], (4 * HHALF,), k);       ki += 1
        dirs.append((w_ih, w_hh, b_ih + b_hh))       # combined bias, PyTorch gate order
    kf = 1.0 / jnp.sqrt(jnp.float32(2 * HID))
    w_fc = uni(keys[ki], (ACTIONS, 2 * HID), kf); ki += 1
    b_fc = uni(keys[ki], (ACTIONS,), kf)
    return dirs, w_fc, b_fc


# ---- pure-JAX reference (full BiLSTM, PyTorch semantics, f32) ----------------------
def _lstm_dir_ref(x_tbe, w_ih, w_hh, b):
    wih, whh = w_ih.T, w_hh.T

    def step(carry, x_t):
        h, c = carry
        g = x_t @ wih + h @ whh + b
        i = jax.nn.sigmoid(g[:, 0 * HHALF:1 * HHALF])
        f = jax.nn.sigmoid(g[:, 1 * HHALF:2 * HHALF])
        gg = jnp.tanh(g[:, 2 * HHALF:3 * HHALF])
        o = jax.nn.sigmoid(g[:, 3 * HHALF:4 * HHALF])
        c_new = f * c + i * gg
        h_new = o * jnp.tanh(c_new)
        return (h_new, c_new), h_new

    h0 = jnp.zeros((BATCH, HHALF), jnp.float32)
    c0 = jnp.zeros((BATCH, HHALF), jnp.float32)
    _, hs = lax.scan(step, (h0, c0), x_tbe)
    return hs  # (T, B, HHALF)


def reference_forward(left_embeds, right_embeds, params):
    dirs, w_fc, b_fc = params
    lf, lb, rf, rb = dirs

    def bilstm_last(x_bte, fwd, bwd):
        x = jnp.transpose(x_bte, (1, 0, 2)).astype(jnp.float32)     # (T, B, E)
        hs_f = _lstm_dir_ref(x, *fwd)                               # (T, B, H)
        hs_b = _lstm_dir_ref(x[::-1], *bwd)[::-1]                   # (T, B, H)
        return jnp.concatenate([hs_f[-1], hs_b[-1]], axis=1)        # (B, HID)

    left_last = bilstm_last(left_embeds, lf, lb)
    right_last = bilstm_last(right_embeds, rf, rb)
    time_out = jnp.concatenate([left_last, right_last], axis=1)
    logits = time_out @ w_fc.T + b_fc
    return jax.nn.log_softmax(logits, axis=1)


# ---- main --------------------------------------------------------------------------
if __name__ == "__main__":
    root = jax.random.PRNGKey(0)
    k_params, k_left, k_right = jax.random.split(root, 3)

    params = make_params(k_params)
    packed = pack_params(params)            # packed ONCE; reuse across calls
    left_embeds = jax.random.normal(k_left, (BATCH, SEQ, EMBED), jnp.float32)
    right_embeds = jax.random.normal(k_right, (BATCH, SEQ, EMBED), jnp.float32)

    out = time_detector_forward(left_embeds, right_embeds, packed)
    out = jax.block_until_ready(out)

    ref = reference_forward(left_embeds, right_embeds, params)
    assert out.shape == (BATCH, ACTIONS)
    # bf16 MXU operands vs f32 reference: loosened tolerance (per perf review).
    assert jnp.allclose(out, ref, atol=5e-2, rtol=5e-2), (out, ref)

    print("KERNEL_OK")
</pallas_src>

<mosaic_0001>
module attributes {stable_mosaic.version = 11 : i64} {
  func.func @time_detector_kernel(%arg0: memref<64x64xbf16, #tpu.memory_space<vmem>>, %arg1: memref<64x256xbf16, #tpu.memory_space<vmem>>, %arg2: memref<1x256xf32, #tpu.memory_space<vmem>>, %arg3: memref<32x128xbf16, #tpu.memory_space<vmem>>, %arg4: memref<32x8xbf16, #tpu.memory_space<vmem>>, %arg5: memref<32x8xbf16, #tpu.memory_space<vmem>>, %arg6: memref<1x8xf32, #tpu.memory_space<vmem>>, %arg7: memref<8x8xf32, #tpu.memory_space<vmem>>) attributes {dimension_semantics = [], scalar_prefetch = 0 : i64, scratch_operands = 0 : i64, tpu.core_type = #tpu.core_type<tc>} {
    %c0 = arith.constant 0 : index
    %c0_0 = arith.constant 0 : index
    %0 = vector.load %arg0[%c0, %c0_0] : memref<64x64xbf16, #tpu.memory_space<vmem>>, vector<64x64xbf16>
    %c0_1 = arith.constant 0 : index
    %c0_2 = arith.constant 0 : index
    %1 = vector.load %arg1[%c0_1, %c0_2] : memref<64x256xbf16, #tpu.memory_space<vmem>>, vector<64x256xbf16>
    %cst = arith.constant dense<0.000000e+00> : vector<64x256xf32>
    %2 = tpu.matmul %0, %1, %cst {dimension_numbers = #tpu.dot_dimension_numbers<[1], [0], [0], [1], [0, 0, 1, 1], [], []>} : vector<64x64xbf16>, vector<64x256xbf16>, vector<64x256xf32> -> vector<64x256xf32>
    %c0_3 = arith.constant 0 : index
    %c0_4 = arith.constant 0 : index
    %3 = vector.load %arg2[%c0_3, %c0_4] : memref<1x256xf32, #tpu.memory_space<vmem>>, vector<1x256xf32>
    %4 = vector.broadcast %3 : vector<1x256xf32> to vector<64x256xf32>
    %5 = arith.addf %2, %4 : vector<64x256xf32>
    %6 = vector.extract_strided_slice %5 {offsets = [56, 128], sizes = [8, 128], strides = [1, 1]} : vector<64x256xf32> to vector<8x128xf32>
    %7 = arith.negf %6 : vector<8x128xf32>
    %8 = math.exp %7 : vector<8x128xf32>
    %cst_5 = arith.constant 1.000000e+00 : f32
    %9 = vector.broadcast %cst_5 : f32 to vector<8x128xf32>
    %10 = arith.addf %9, %8 : vector<8x128xf32>
    %11 = arith.divf %9, %10 : vector<8x128xf32>
    %12 = vector.extract_strided_slice %11 {offsets = [0, 0], sizes = [8, 32], strides = [1, 1]} : vector<8x128xf32> to vector<8x32xf32>
    %13 = vector.extract_strided_slice %11 {offsets = [0, 96], sizes = [8, 32], strides = [1, 1]} : vector<8x128xf32> to vector<8x32xf32>
    %14 = vector.extract_strided_slice %6 {offsets = [0, 64], sizes = [8, 32], strides = [1, 1]} : vector<8x128xf32> to vector<8x32xf32>
    %15 = math.tanh %14 : vector<8x32xf32>
    %16 = arith.mulf %12, %15 : vector<8x32xf32>
    %17 = math.tanh %16 : vector<8x32xf32>
    %18 = arith.mulf %13, %17 : vector<8x32xf32>
    %c0_6 = arith.constant 0 : index
    %c0_7 = arith.constant 0 : index
    %19 = vector.load %arg3[%c0_6, %c0_7] : memref<32x128xbf16, #tpu.memory_space<vmem>>, vector<32x128xbf16>
    %20 = vector.extract_strided_slice %5 {offsets = [0, 0], sizes = [8, 128], strides = [1, 1]} : vector<64x256xf32> to vector<8x128xf32>
    %21 = arith.negf %20 : vector<8x128xf32>
    %22 = math.exp %21 : vector<8x128xf32>
    %cst_8 = arith.constant 1.000000e+00 : f32
    %23 = vector.broadcast %cst_8 : f32 to vector<8x128xf32>
    %24 = arith.addf %23, %22 : vector<8x128xf32>
    %25 = arith.divf %23, %24 : vector<8x128xf32>
    %26 = vector.extract_strided_slice %25 {offsets = [0, 0], sizes = [8, 32], strides = [1, 1]} : vector<8x128xf32> to vector<8x32xf32>
    %27 = vector.extract_strided_slice %25 {offsets = [0, 96], sizes = [8, 32], strides = [1, 1]} : vector<8x128xf32> to vector<8x32xf32>
    %28 = vector.extract_strided_slice %20 {offsets = [0, 64], sizes = [8, 32], strides = [1, 1]} : vector<8x128xf32> to vector<8x32xf32>
    %29 = math.tanh %28 : vector<8x32xf32>
    %30 = arith.mulf %26, %29 : vector<8x32xf32>
    %31 = math.tanh %30 : vector<8x32xf32>
    %32 = arith.mulf %27, %31 : vector<8x32xf32>
    %33 = vector.extract_strided_slice %5 {offsets = [8, 0], sizes = [8, 128], strides = [1, 1]} : vector<64x256xf32> to vector<8x128xf32>
    %34 = arith.truncf %32 : vector<8x32xf32> to vector<8x32xbf16>
    %cst_9 = arith.constant dense<0.000000e+00> : vector<8x128xf32>
    %35 = tpu.matmul %34, %19, %cst_9 {dimension_numbers = #tpu.dot_dimension_numbers<[1], [0], [0], [1], [0, 0, 1, 1], [], []>} : vector<8x32xbf16>, vector<32x128xbf16>, vector<8x128xf32> -> vector<8x128xf32>
    %36 = arith.addf %33, %35 : vector<8x128xf32>
    %37 = arith.negf %36 : vector<8x128xf32>
    %38 = math.exp %37 : vector<8x128xf32>
    %cst_10 = arith.constant 1.000000e+00 : f32
    %39 = vector.broadcast %cst_10 : f32 to vector<8x128xf32>
    %40 = arith.addf %39, %38 : vector<8x128xf32>
    %41 = arith.divf %39, %40 : vector<8x128xf32>
    %42 = vector.extract_strided_slice %41 {offsets = [0, 0], sizes = [8, 32], strides = [1, 1]} : vector<8x128xf32> to vector<8x32xf32>
    %43 = vector.extract_strided_slice %41 {offsets = [0, 96], sizes = [8, 32], strides = [1, 1]} : vector<8x128xf32> to vector<8x32xf32>
    %44 = vector.extract_strided_slice %36 {offsets = [0, 64], sizes = [8, 32], strides = [1, 1]} : vector<8x128xf32> to vector<8x32xf32>
    %45 = math.tanh %44 : vector<8x32xf32>
    %46 = vector.extract_strided_slice %41 {offsets = [0, 32], sizes = [8, 32], strides = [1, 1]} : vector<8x128xf32> to vector<8x32xf32>
    %47 = arith.mulf %46, %30 : vector<8x32xf32>
    %48 = arith.mulf %42, %45 : vector<8x32xf32>
    %49 = arith.addf %47, %48 : vector<8x32xf32>
    %50 = math.tanh %49 : vector<8x32xf32>
    %51 = arith.mulf %43, %50 : vector<8x32xf32>
    %52 = vector.extract_strided_slice %5 {offsets = [16, 0], sizes = [8, 128], strides = [1, 1]} : vector<64x256xf32> to vector<8x128xf32>
    %53 = arith.truncf %51 : vector<8x32xf32> to vector<8x32xbf16>
    %cst_11 = arith.constant dense<0.000000e+00> : vector<8x128xf32>
    %54 = tpu.matmul %53, %19, %cst_11 {dimension_numbers = #tpu.dot_dimension_numbers<[1], [0], [0], [1], [0, 0, 1, 1], [], []>} : vector<8x32xbf16>, vector<32x128xbf16>, vector<8x128xf32> -> vector<8x128xf32>
    %55 = arith.addf %52, %54 : vector<8x128xf32>
    %56 = arith.negf %55 : vector<8x128xf32>
    %57 = math.exp %56 : vector<8x128xf32>
    %cst_12 = arith.constant 1.000000e+00 : f32
    %58 = vector.broadcast %cst_12 : f32 to vector<8x128xf32>
    %59 = arith.addf %58, %57 : vector<8x128xf32>
    %60 = arith.divf %58, %59 : vector<8x128xf32>
    %61 = vector.extract_strided_slice %60 {offsets = [0, 0], sizes = [8, 32], strides = [1, 1]} : vector<8x128xf32> to vector<8x32xf32>
    %62 = vector.extract_strided_slice %60 {offsets = [0, 96], sizes = [8, 32], strides = [1, 1]} : vector<8x128xf32> to vector<8x32xf32>
    %63 = vector.extract_strided_slice %55 {offsets = [0, 64], sizes = [8, 32], strides = [1, 1]} : vector<8x128xf32> to vector<8x32xf32>
    %64 = math.tanh %63 : vector<8x32xf32>
    %65 = vector.extract_strided_slice %60 {offsets = [0, 32], sizes = [8, 32], strides = [1, 1]} : vector<8x128xf32> to vector<8x32xf32>
    %66 = arith.mulf %65, %49 : vector<8x32xf32>
    %67 = arith.mulf %61, %64 : vector<8x32xf32>
    %68 = arith.addf %66, %67 : vector<8x32xf32>
    %69 = math.tanh %68 : vector<8x32xf32>
    %70 = arith.mulf %62, %69 : vector<8x32xf32>
    %71 = vector.extract_strided_slice %5 {offsets = [24, 0], sizes = [8, 128], strides = [1, 1]} : vector<64x256xf32> to vector<8x128xf32>
    %72 = arith.truncf %70 : vector<8x32xf32> to vector<8x32xbf16>
    %cst_13 = arith.constant dense<0.000000e+00> : vector<8x128xf32>
    %73 = tpu.matmul %72, %19, %cst_13 {dimension_numbers = #tpu.dot_dimension_numbers<[1], [0], [0], [1], [0, 0, 1, 1], [], []>} : vector<8x32xbf16>, vector<32x128xbf16>, vector<8x128xf32> -> vector<8x128xf32>
    %74 = arith.addf %71, %73 : vector<8x128xf32>
    %75 = arith.negf %74 : vector<8x128xf32>
    %76 = math.exp %75 : vector<8x128xf32>
    %cst_14 = arith.constant 1.000000e+00 : f32
    %77 = vector.broadcast %cst_14 : f32 to vector<8x128xf32>
    %78 = arith.addf %77, %76 : vector<8x128xf32>
    %79 = arith.divf %77, %78 : vector<8x128xf32>
    %80 = vector.extract_strided_slice %79 {offsets = [0, 0], sizes = [8, 32], strides = [1, 1]} : vector<8x128xf32> to vector<8x32xf32>
    %81 = vector.extract_strided_slice %79 {offsets = [0, 96], sizes = [8, 32], strides = [1, 1]} : vector<8x128xf32> to vector<8x32xf32>
    %82 = vector.extract_strided_slice %74 {offsets = [0, 64], sizes = [8, 32], strides = [1, 1]} : vector<8x128xf32> to vector<8x32xf32>
    %83 = math.tanh %82 : vector<8x32xf32>
    %84 = vector.extract_strided_slice %79 {offsets = [0, 32], sizes = [8, 32], strides = [1, 1]} : vector<8x128xf32> to vector<8x32xf32>
    %85 = arith.mulf %84, %68 : vector<8x32xf32>
    %86 = arith.mulf %80, %83 : vector<8x32xf32>
    %87 = arith.addf %85, %86 : vector<8x32xf32>
    %88 = math.tanh %87 : vector<8x32xf32>
    %89 = arith.mulf %81, %88 : vector<8x32xf32>
    %90 = vector.extract_strided_slice %5 {offsets = [32, 0], sizes = [8, 128], strides = [1, 1]} : vector<64x256xf32> to vector<8x128xf32>
    %91 = arith.truncf %89 : vector<8x32xf32> to vector<8x32xbf16>
    %cst_15 = arith.constant dense<0.000000e+00> : vector<8x128xf32>
    %92 = tpu.matmul %91, %19, %cst_15 {dimension_numbers = #tpu.dot_dimension_numbers<[1], [0], [0], [1], [0, 0, 1, 1], [], []>} : vector<8x32xbf16>, vector<32x128xbf16>, vector<8x128xf32> -> vector<8x128xf32>
    %93 = arith.addf %90, %92 : vector<8x128xf32>
    %94 = arith.negf %93 : vector<8x128xf32>
    %95 = math.exp %94 : vector<8x128xf32>
    %cst_16 = arith.constant 1.000000e+00 : f32
    %96 = vector.broadcast %cst_16 : f32 to vector<8x128xf32>
    %97 = arith.addf %96, %95 : vector<8x128xf32>
    %98 = arith.divf %96, %97 : vector<8x128xf32>
    %99 = vector.extract_strided_slice %98 {offsets = [0, 0], sizes = [8, 32], strides = [1, 1]} : vector<8x128xf32> to vector<8x32xf32>
    %100 = vector.extract_strided_slice %98 {offsets = [0, 96], sizes = [8, 32], strides = [1, 1]} : vector<8x128xf32> to vector<8x32xf32>
    %101 = vector.extract_strided_slice %93 {offsets = [0, 64], sizes = [8, 32], strides = [1, 1]} : vector<8x128xf32> to vector<8x32xf32>
    %102 = math.tanh %101 : vector<8x32xf32>
    %103 = vector.extract_strided_slice %98 {offsets = [0, 32], sizes = [8, 32], strides = [1, 1]} : vector<8x128xf32> to vector<8x32xf32>
    %104 = arith.mulf %103, %87 : vector<8x32xf32>
    %105 = arith.mulf %99, %102 : vector<8x32xf32>
    %106 = arith.addf %104, %105 : vector<8x32xf32>
    %107 = math.tanh %106 : vector<8x32xf32>
    %108 = arith.mulf %100, %107 : vector<8x32xf32>
    %109 = vector.extract_strided_slice %5 {offsets = [40, 0], sizes = [8, 128], strides = [1, 1]} : vector<64x256xf32> to vector<8x128xf32>
    %110 = arith.truncf %108 : vector<8x32xf32> to vector<8x32xbf16>
    %cst_17 = arith.constant dense<0.000000e+00> : vector<8x128xf32>
    %111 = tpu.matmul %110, %19, %cst_17 {dimension_numbers = #tpu.dot_dimension_numbers<[1], [0], [0], [1], [0, 0, 1, 1], [], []>} : vector<8x32xbf16>, vector<32x128xbf16>, vector<8x128xf32> -> vector<8x128xf32>
    %112 = arith.addf %109, %111 : vector<8x128xf32>
    %113 = arith.negf %112 : vector<8x128xf32>
    %114 = math.exp %113 : vector<8x128xf32>
    %cst_18 = arith.constant 1.000000e+00 : f32
    %115 = vector.broadcast %cst_18 : f32 to vector<8x128xf32>
    %116 = arith.addf %115, %114 : vector<8x128xf32>
    %117 = arith.divf %115, %116 : vector<8x128xf32>
    %118 = vector.extract_strided_slice %117 {offsets = [0, 0], sizes = [8, 32], strides = [1, 1]} : vector<8x128xf32> to vector<8x32xf32>
    %119 = vector.extract_strided_slice %117 {offsets = [0, 96], sizes = [8, 32], strides = [1, 1]} : vector<8x128xf32> to vector<8x32xf32>
    %120 = vector.extract_strided_slice %112 {offsets = [0, 64], sizes = [8, 32], strides = [1, 1]} : vector<8x128xf32> to vector<8x32xf32>
    %121 = math.tanh %120 : vector<8x32xf32>
    %122 = vector.extract_strided_slice %117 {offsets = [0, 32], sizes = [8, 32], strides = [1, 1]} : vector<8x128xf32> to vector<8x32xf32>
    %123 = arith.mulf %122, %106 : vector<8x32xf32>
    %124 = arith.mulf %118, %121 : vector<8x32xf32>
    %125 = arith.addf %123, %124 : vector<8x32xf32>
    %126 = math.tanh %125 : vector<8x32xf32>
    %127 = arith.mulf %119, %126 : vector<8x32xf32>
    %128 = vector.extract_strided_slice %5 {offsets = [48, 0], sizes = [8, 128], strides = [1, 1]} : vector<64x256xf32> to vector<8x128xf32>
    %129 = arith.truncf %127 : vector<8x32xf32> to vector<8x32xbf16>
    %cst_19 = arith.constant dense<0.000000e+00> : vector<8x128xf32>
    %130 = tpu.matmul %129, %19, %cst_19 {dimension_numbers = #tpu.dot_dimension_numbers<[1], [0], [0], [1], [0, 0, 1, 1], [], []>} : vector<8x32xbf16>, vector<32x128xbf16>, vector<8x128xf32> -> vector<8x128xf32>
    %131 = arith.addf %128, %130 : vector<8x128xf32>
    %132 = arith.negf %131 : vector<8x128xf32>
    %133 = math.exp %132 : vector<8x128xf32>
    %cst_20 = arith.constant 1.000000e+00 : f32
    %134 = vector.broadcast %cst_20 : f32 to vector<8x128xf32>
    %135 = arith.addf %134, %133 : vector<8x128xf32>
    %136 = arith.divf %134, %135 : vector<8x128xf32>
    %137 = vector.extract_strided_slice %136 {offsets = [0, 0], sizes = [8, 32], strides = [1, 1]} : vector<8x128xf32> to vector<8x32xf32>
    %138 = vector.extract_strided_slice %136 {offsets = [0, 96], sizes = [8, 32], strides = [1, 1]} : vector<8x128xf32> to vector<8x32xf32>
    %139 = vector.extract_strided_slice %131 {offsets = [0, 64], sizes = [8, 32], strides = [1, 1]} : vector<8x128xf32> to vector<8x32xf32>
    %140 = math.tanh %139 : vector<8x32xf32>
    %141 = vector.extract_strided_slice %136 {offsets = [0, 32], sizes = [8, 32], strides = [1, 1]} : vector<8x128xf32> to vector<8x32xf32>
    %142 = arith.mulf %141, %125 : vector<8x32xf32>
    %143 = arith.mulf %137, %140 : vector<8x32xf32>
    %144 = arith.addf %142, %143 : vector<8x32xf32>
    %145 = math.tanh %144 : vector<8x32xf32>
    %146 = arith.mulf %138, %145 : vector<8x32xf32>
    %147 = vector.extract_strided_slice %5 {offsets = [56, 0], sizes = [8, 128], strides = [1, 1]} : vector<64x256xf32> to vector<8x128xf32>
    %148 = arith.truncf %146 : vector<8x32xf32> to vector<8x32xbf16>
    %cst_21 = arith.constant dense<0.000000e+00> : vector<8x128xf32>
    %149 = tpu.matmul %148, %19, %cst_21 {dimension_numbers = #tpu.dot_dimension_numbers<[1], [0], [0], [1], [0, 0, 1, 1], [], []>} : vector<8x32xbf16>, vector<32x128xbf16>, vector<8x128xf32> -> vector<8x128xf32>
    %150 = arith.addf %147, %149 : vector<8x128xf32>
    %151 = arith.negf %150 : vector<8x128xf32>
    %152 = math.exp %151 : vector<8x128xf32>
    %cst_22 = arith.constant 1.000000e+00 : f32
    %153 = vector.broadcast %cst_22 : f32 to vector<8x128xf32>
    %154 = arith.addf %153, %152 : vector<8x128xf32>
    %155 = arith.divf %153, %154 : vector<8x128xf32>
    %156 = vector.extract_strided_slice %155 {offsets = [0, 0], sizes = [8, 32], strides = [1, 1]} : vector<8x128xf32> to vector<8x32xf32>
    %157 = vector.extract_strided_slice %155 {offsets = [0, 96], sizes = [8, 32], strides = [1, 1]} : vector<8x128xf32> to vector<8x32xf32>
    %158 = vector.extract_strided_slice %150 {offsets = [0, 64], sizes = [8, 32], strides = [1, 1]} : vector<8x128xf32> to vector<8x32xf32>
    %159 = math.tanh %158 : vector<8x32xf32>
    %160 = vector.extract_strided_slice %155 {offsets = [0, 32], sizes = [8, 32], strides = [1, 1]} : vector<8x128xf32> to vector<8x32xf32>
    %161 = arith.mulf %160, %144 : vector<8x32xf32>
    %162 = arith.mulf %156, %159 : vector<8x32xf32>
    %163 = arith.addf %161, %162 : vector<8x32xf32>
    %164 = math.tanh %163 : vector<8x32xf32>
    %165 = arith.mulf %157, %164 : vector<8x32xf32>
    %166 = arith.truncf %165 : vector<8x32xf32> to vector<8x32xbf16>
    %c0_23 = arith.constant 0 : index
    %c0_24 = arith.constant 0 : index
    %167 = vector.load %arg4[%c0_23, %c0_24] : memref<32x8xbf16, #tpu.memory_space<vmem>>, vector<32x8xbf16>
    %cst_25 = arith.constant dense<0.000000e+00> : vector<8x8xf32>
    %168 = tpu.matmul %166, %167, %cst_25 {dimension_numbers = #tpu.dot_dimension_numbers<[1], [0], [0], [1], [0, 0, 1, 1], [], []>} : vector<8x32xbf16>, vector<32x8xbf16>, vector<8x8xf32> -> vector<8x8xf32>
    %169 = arith.truncf %18 : vector<8x32xf32> to vector<8x32xbf16>
    %c0_26 = arith.constant 0 : index
    %c0_27 = arith.constant 0 : index
    %170 = vector.load %arg5[%c0_26, %c0_27] : memref<32x8xbf16, #tpu.memory_space<vmem>>, vector<32x8xbf16>
    %cst_28 = arith.constant dense<0.000000e+00> : vector<8x8xf32>
    %171 = tpu.matmul %169, %170, %cst_28 {dimension_numbers = #tpu.dot_dimension_numbers<[1], [0], [0], [1], [0, 0, 1, 1], [], []>} : vector<8x32xbf16>, vector<32x8xbf16>, vector<8x8xf32> -> vector<8x8xf32>
    %172 = arith.addf %168, %171 : vector<8x8xf32>
    %c0_29 = arith.constant 0 : index
    %c0_30 = arith.constant 0 : index
    %173 = vector.load %arg6[%c0_29, %c0_30] : memref<1x8xf32, #tpu.memory_space<vmem>>, vector<1x8xf32>
    %174 = vector.broadcast %173 : vector<1x8xf32> to vector<8x8xf32>
    %175 = arith.addf %172, %174 : vector<8x8xf32>
    %cst_31 = arith.constant dense<0xFF800000> : vector<8xf32>
    %176 = vector.multi_reduction <maximumf>, %175, %cst_31 [1] : vector<8x8xf32> to vector<8xf32>
    %177 = vector.shape_cast %176 : vector<8xf32> to vector<8x1xf32>
    %178 = vector.broadcast %177 : vector<8x1xf32> to vector<8x8xf32>
    %179 = arith.subf %175, %178 : vector<8x8xf32>
    %180 = math.exp %179 : vector<8x8xf32>
    %cst_32 = arith.constant dense<0.000000e+00> : vector<8xf32>
    %181 = vector.multi_reduction <add>, %180, %cst_32 [1] : vector<8x8xf32> to vector<8xf32>
    %182 = vector.shape_cast %181 : vector<8xf32> to vector<8x1xf32>
    %183 = math.log %182 : vector<8x1xf32>
    %184 = vector.broadcast %183 : vector<8x1xf32> to vector<8x8xf32>
    %185 = arith.subf %179, %184 : vector<8x8xf32>
    %c0_33 = arith.constant 0 : index
    %c0_34 = arith.constant 0 : index
    %186 = vector.load %arg7[%c0_33, %c0_34] : memref<8x8xf32, #tpu.memory_space<vmem>>, vector<8x8xf32>
    tpu.vector_store %arg7[%c0_33, %c0_34], %185 {strides = array<i32>} : memref<8x8xf32, #tpu.memory_space<vmem>>, vector<8x8xf32>,
    return
  }
}

</mosaic_0001>

<llo_original>
// kernel: tpu_custom_call.1
$region0: #{tpu_custom_call.1}
  #allocation0 [shape = 'u32[]', space=smem, size = 0x4, offset = 0x4, fixed_abs, tag = 'smem constant byte address 0x4 - core index']
  #allocation1 [shape = 'u32[144,128]{1,0:T(1,128)}', space=vmem, size = 0x12000, scoped, tag = 'internal scratch']
  %s0 = inlined_call_operand.vmem [shape: bf16[64,64], index: 0, kind: input, shape index: {}]
  %s1 = inlined_call_operand.hbm [shape: bf16[64,256], index: 1, kind: input, shape index: {}]
  %s2 = inlined_call_operand.vmem [shape: f32[1,256], index: 2, kind: input, shape index: {}]
  %s3 = inlined_call_operand.vmem [shape: bf16[32,128], index: 3, kind: input, shape index: {}]
  %s4 = inlined_call_operand.vmem [shape: bf16[32,8], index: 4, kind: input, shape index: {}]
  %s5 = inlined_call_operand.vmem [shape: bf16[32,8], index: 5, kind: input, shape index: {}]
  %s6 = inlined_call_operand.vmem [shape: f32[1,8], index: 6, kind: input, shape index: {}]
  %s7 = inlined_call_operand.hbm [shape: f32[8,8], index: 7, kind: output, shape index: {}]
  %s8 = sld [smem:[#allocation0]]
  $region42: #{tpu_custom_call.1} parent=0
    _
  %s10 = ssub.s32 1, %s8
  %s11 = scalar_select 0, %s10, %s8
  $region1: #{tpu_custom_call.1} parent=0
    #allocation2 [shape = 'u8[32768]{0}', space=vmem, size = 0x8000, scoped, tag = 'input window, operand 1, single buffered']
    #allocation3 [shape = 's32[1]{0}', space=sflag, size = 0x4, scoped, tag = 'scoped memory for tpu_custom_call.1']
    #allocation4 [shape = 's32[1]{0}', space=sflag, size = 0x4, scoped, tag = 'scoped memory for tpu_custom_call.1']
    #allocation5 [shape = 'u8[4096]{0}', space=vmem, size = 0x1000, scoped, tag = 'output window, operand 0, single buffered']
    %12 = vsyncpa [#allocation3], 0
    %13 = vsyncpa [#allocation4], 0
    // Predicated region
    $region2: #{tpu_custom_call.1} parent=1 // pred_check
      _
    $region3: #{tpu_custom_call.1} parent=1 // pred_check_branch
      %15 = sbr.rel (0) target = $region5
    $region4: #{tpu_custom_call.1} parent=1 // pred_region
      _
    $region5: #{tpu_custom_call.1} parent=1 // pred_fallthru
      _
    // Predicated region
    $region6: #{tpu_custom_call.1} parent=1 // pred_check
      _
    $region7: #{tpu_custom_call.1} parent=1 // pred_check_branch
      %17 = sbr.rel (0) target = $region9
    $region8: #{tpu_custom_call.1} parent=1 // pred_region
      %s19 = ssub.s32 1024, 1024
      %20 = vsyncadd [#allocation3], %s19
      %s21 = sshll.u32 [#allocation2], 4
      %s22 = int_to_ptr.vmem [resolvable:$true] %s21
      %27 = dma.hbm_to_vmem [thread:$0]  %s1, 1024, %s22, [#allocation3], 128, 128, 8
    $region9: #{tpu_custom_call.1} parent=1 // pred_fallthru
      _
    // Predicated region
    $region10: #{tpu_custom_call.1} parent=1 // pred_check
      _
    $region11: #{tpu_custom_call.1} parent=1 // pred_check_branch
      %29 = sbr.rel (0) target = $region13
    $region12: #{tpu_custom_call.1} parent=1 // pred_region
      _
    $region13: #{tpu_custom_call.1} parent=1 // pred_fallthru
      _
    // Predicated region
    $region14: #{tpu_custom_call.1} parent=1 // pred_check
      _
    $region15: #{tpu_custom_call.1} parent=1 // pred_check_branch
      %31 = sbr.rel (0) target = $region17
    $region16: #{tpu_custom_call.1} parent=1 // pred_region
      _
    $region17: #{tpu_custom_call.1} parent=1 // pred_fallthru
      _
    // Predicated region
    $region18: #{tpu_custom_call.1} parent=1 // pred_check
      _
    $region19: #{tpu_custom_call.1} parent=1 // pred_check_branch
      %33 = sbr.rel (0) target = $region21
    $region20: #{tpu_custom_call.1} parent=1 // pred_region
      _
    $region21: #{tpu_custom_call.1} parent=1 // pred_fallthru
      _
    // Predicated region
    $region22: #{tpu_custom_call.1} parent=1 // pred_check
      _
    $region23: #{tpu_custom_call.1} parent=1 // pred_check_branch
      %35 = sbr.rel (0) target = $region25
    $region24: #{tpu_custom_call.1} parent=1 // pred_region
      _
    $region25: #{tpu_custom_call.1} parent=1 // pred_fallthru
      _
    // Predicated region
    $region26: #{tpu_custom_call.1} parent=1 // pred_check
      _
    $region27: #{tpu_custom_call.1} parent=1 // pred_check_branch
      %37 = sbr.rel (0) target = $region29
    $region28: #{tpu_custom_call.1} parent=1 // pred_region
      _
    $region29: #{tpu_custom_call.1} parent=1 // pred_fallthru
      _
    // Predicated region
    $region30: #{tpu_custom_call.1} parent=1 // pred_check
      _
    $region31: #{tpu_custom_call.1} parent=1 // pred_check_branch
      %39 = sbr.rel (0) target = $region33
    $region32: #{tpu_custom_call.1} parent=1 // pred_region
      %40 = dma.done [#allocation3], 1024
    $region33: #{tpu_custom_call.1} parent=1 // pred_fallthru
      _
    %v42 = vld [vmem:[%s0] sm:$0xf]
    %v43 = vld [vmem:[%s0 + $0x4] sm:$0xf]
    %v44 = vld [vmem:[%s0 + $0x8] sm:$0xf]
    %v45 = vld [vmem:[%s0 + $0xc] sm:$0xf]
    %v46 = vld [vmem:[%s0 + $0x10] sm:$0xf]
    %v47 = vld [vmem:[%s0 + $0x14] sm:$0xf]
    %v48 = vld [vmem:[%s0 + $0x18] sm:$0xf]
    %v49 = vld [vmem:[%s0 + $0x1c] sm:$0xf]
    %v50 = vld [vmem:[#allocation2] sm:$0xff]
    %v51 = vld [vmem:[#allocation2 + $0x8] sm:$0xff]
    %v52 = vld [vmem:[#allocation2 + $0x10] sm:$0xff]
    %v53 = vld [vmem:[#allocation2 + $0x18] sm:$0xff]
    %v54 = vld [vmem:[#allocation2 + $0x20] sm:$0xff]
    %v55 = vld [vmem:[#allocation2 + $0x28] sm:$0xff]
    %v56 = vld [vmem:[#allocation2 + $0x30] sm:$0xff]
    %v57 = vld [vmem:[#allocation2 + $0x38] sm:$0xff]
    %v58 = vld [vmem:[%s2] sm:$0x3]
    %v60 = vlaneseq
    %v61 = vshrl.u32 %v60, 7
    %v62 = vsub.s32 0, %v61
    %v63 = vrot.slane %v58, %v62
    %v64 = vlaneseq
    %v65 = vshrl.u32 %v64, 7
    %v66 = vsub.s32 1, %v65
    %v67 = vrot.slane %v58, %v66
    %v78 = vunpack.c.l.b16 %v42
    %v79 = vunpack.c.l.b16 %v43
    %v80 = vunpack.c.l.b16 %v44
    %v81 = vunpack.c.l.b16 %v45
    %v82 = vunpack.c.l.b16 %v46
    %v83 = vunpack.c.l.b16 %v47
    %v84 = vunpack.c.l.b16 %v48
    %v85 = vunpack.c.l.b16 %v49
    %v86 = vpack.c.b16 %v79, %v78
    %v87 = vpack.c.b16 %v81, %v80
    %v88 = vpack.c.b16 %v83, %v82
    %v89 = vpack.c.b16 %v85, %v84
    %v98 = vunpack.c.l.b16 %v50
    %v99 = vunpack.c.h.b16 %v50
    %v100 = vunpack.c.l.b16 %v51
    %v101 = vunpack.c.h.b16 %v51
    %v102 = vunpack.c.l.b16 %v52
    %v103 = vunpack.c.h.b16 %v52
    %v104 = vunpack.c.l.b16 %v53
    %v105 = vunpack.c.h.b16 %v53
    %v106 = vunpack.c.l.b16 %v54
    %v107 = vunpack.c.h.b16 %v54
    %v108 = vunpack.c.l.b16 %v55
    %v109 = vunpack.c.h.b16 %v55
    %v110 = vunpack.c.l.b16 %v56
    %v111 = vunpack.c.h.b16 %v56
    %v112 = vunpack.c.l.b16 %v57
    %v113 = vunpack.c.h.b16 %v57
    %v114 = vpack.c.b16 %v100, %v98
    %v115 = vpack.c.b16 %v101, %v99
    %v116 = vpack.c.b16 %v104, %v102
    %v117 = vpack.c.b16 %v105, %v103
    %v118 = vpack.c.b16 %v108, %v106
    %v119 = vpack.c.b16 %v109, %v107
    %v120 = vpack.c.b16 %v112, %v110
    %v121 = vpack.c.b16 %v113, %v111
    %vm130 = vcmask 523264
    %v132 = vsel %vm130, %v86, 0
    %v135 = vsel %vm130, %v87, 0
    %v138 = vsel %vm130, %v88, 0
    %v141 = vsel %vm130, %v89, 0
    %143 = vmatprep.subr.bf16.mxu0 %v115
    %144 = vmatpush1.bf16.msra.mxu0 %v114
    %145 = vmatprep.subr.bf16.mxu0 %v117
    %146 = vmatpush1.bf16.msra.mxu0 %v116
    %147 = vmatprep.subr.bf16.mxu0 %v119
    %148 = vmatpush1.bf16.msra.mxu0 %v118
    %149 = vmatprep.subr.bf16.mxu0 %v121
    %150 = vmatpush1.bf16.msra.mxu0 %v120
    %151 = vmatprep.subr.bf16.mxu0 0
    %152 = vmatpush1.bf16.msra.mxu0 0
    %153 = vmatprep.subr.bf16.mxu0 0
    %154 = vmatpush1.bf16.msra.mxu0 0
    %155 = vmatprep.subr.bf16.mxu0 0
    %156 = vmatpush1.bf16.msra.mxu0 0
    %157 = vmatprep.subr.bf16.mxu0 0
    %158 = vmatpush1.bf16.msra.mxu0 0
    %159 = vmatprep.subr.bf16.mxu0 0
    %160 = vmatpush1.bf16.msra.mxu0 0
    %161 = vmatprep.subr.bf16.mxu0 0
    %162 = vmatpush1.bf16.msra.mxu0 0
    %163 = vmatprep.subr.bf16.mxu0 0
    %164 = vmatpush1.bf16.msra.mxu0 0
    %165 = vmatprep.subr.bf16.mxu0 0
    %166 = vmatpush1.bf16.msra.mxu0 0
    %167 = vmatprep.subr.bf16.mxu0 0
    %168 = vmatpush1.bf16.msra.mxu0 0
    %169 = vmatprep.subr.bf16.mxu0 0
    %170 = vmatpush1.bf16.msra.mxu0 0
    %171 = vmatprep.subr.bf16.mxu0 0
    %172 = vmatpush1.bf16.msra.mxu0 0
    %173 = vmatprep.subr.bf16.mxu0 0
    %174 = vmatpush1.bf16.msra.mxu0 0
    %175 = vmatprep.mubr.bf16.mxu0 0
    %176 = vmatmul.mubr.bf16.gmra.mrb[0].mxu0 %v132
    %v177 = vpop.f32.mrb[0].mxu0
    %v178 = vadd.f32 %v63, %v177
    %v179 = vpop.f32.mrb[0].mxu0
    %v180 = vpop.f32.mrb[0].mxu0
    %v181 = vadd.f32 %v63, %v180
    %v182 = vpop.f32.mrb[0].mxu0
    %183 = vmatprep.mubr.bf16.mxu0 0
    %184 = vmatmul.mubr.bf16.gmra.mrb[0].mxu0 %v135
    %v185 = vpop.f32.mrb[0].mxu0
    %v186 = vadd.f32 %v63, %v185
    %v187 = vpop.f32.mrb[0].mxu0
    %v188 = vpop.f32.mrb[0].mxu0
    %v189 = vadd.f32 %v63, %v188
    %v190 = vpop.f32.mrb[0].mxu0
    %191 = vmatprep.mubr.bf16.mxu0 0
    %192 = vmatmul.mubr.bf16.gmra.mrb[0].mxu0 %v138
    %v193 = vpop.f32.mrb[0].mxu0
    %v194 = vadd.f32 %v63, %v193
    %v195 = vpop.f32.mrb[0].mxu0
    %v196 = vpop.f32.mrb[0].mxu0
    %v197 = vadd.f32 %v63, %v196
    %v198 = vpop.f32.mrb[0].mxu0
    %199 = vmatprep.mubr.bf16.mxu0 0
    %200 = vmatmul.mubr.bf16.gmra.mrb[0].mxu0 %v141
    %v201 = vpop.f32.mrb[0].mxu0
    %v202 = vadd.f32 %v63, %v201
    %v203 = vpop.f32.mrb[0].mxu0
    %v204 = vpop.f32.mrb[0].mxu0
    %v205 = vadd.f32 %v63, %v204
    %v206 = vpop.f32.mrb[0].mxu0
    %v207 = vadd.f32 %v67, %v206
    %208 = vdwg.mxu0
    %v209 = vxor.u32 %v207, 2147483648
    %v210 = vmul.f32 %v209, 1.442695
    %v211 = vpow.pop %v210
    %v212 = vadd.f32 %v211, 1.0
    %v213 = vrcp.pop %v212
    %v214 = vmul.f32 1.0, %v213
    %v215 = vtanh.pop %v207
    %217 = vrot.lane.b32.xlu0 %v215, 64
    %v218 = vpop.permute.xlu0 %217
    %v220 = vmul.f32 %v214, %v218
    %v221 = vtanh.pop %v220
    %223 = vrot.lane.b32.xlu0 %v221, 96
    %v224 = vpop.permute.xlu0 %223
    %v226 = vmul.f32 %v214, %v224
    %v227 = vld [vmem:[%s3] sm:$0xf]
    %v228 = vld [vmem:[%s3 + $0x4] sm:$0xf]
    %v229 = vld [vmem:[%s3 + $0x8] sm:$0xf]
    %v230 = vld [vmem:[%s3 + $0xc] sm:$0xf]
    %v231 = vxor.u32 %v178, 2147483648
    %v232 = vmul.f32 %v231, 1.442695
    %v233 = vpow.pop %v232
    %v234 = vadd.f32 %v233, 1.0
    %v235 = vrcp.pop %v234
    %v236 = vmul.f32 1.0, %v235
    %v237 = vtanh.pop %v178
    %239 = vrot.lane.b32.xlu0 %v237, 64
    %v240 = vpop.permute.xlu0 %239
    %v242 = vmul.f32 %v236, %v240
    %v243 = vtanh.pop %v242
    %245 = vrot.lane.b32.xlu0 %v243, 96
    %v246 = vpop.permute.xlu0 %245
    %v248 = vmul.f32 %v236, %v246
    %v249 = vpack.c.bf16 %v248, %v248
    %251 = vrot.lane.b32.xlu0 %v249, 32
    %v252 = vpop.permute.xlu0 %251
    %v257 = vunpack.c.l.b16 %v227
    %v258 = vunpack.c.l.b16 %v228
    %v259 = vunpack.c.l.b16 %v229
    %v260 = vunpack.c.l.b16 %v230
    %v261 = vpack.c.b16 %v258, %v257
    %v262 = vpack.c.b16 %v260, %v259
    %vm265 = vcmask 261120
    %v267 = vsel %vm265, %v252, 0
    %269 = vmatprep.subr.bf16.mxu0 0
    %270 = vmatpush1.bf16.msra.mxu0 %v261
    %271 = vmatprep.subr.bf16.mxu0 0
    %272 = vmatpush1.bf16.msra.mxu0 %v262
    %273 = vmatprep.subr.bf16.mxu0 0
    %274 = vmatpush1.bf16.msra.mxu0 0
    %275 = vmatprep.subr.bf16.mxu0 0
    %276 = vmatpush1.bf16.msra.mxu0 0
    %277 = vmatprep.subr.bf16.mxu0 0
    %278 = vmatpush1.bf16.msra.mxu0 0
    %279 = vmatprep.subr.bf16.mxu0 0
    %280 = vmatpush1.bf16.msra.mxu0 0
    %281 = vmatprep.subr.bf16.mxu0 0
    %282 = vmatpush1.bf16.msra.mxu0 0
    %283 = vmatprep.subr.bf16.mxu0 0
    %284 = vmatpush1.bf16.msra.mxu0 0
    %285 = vmatprep.subr.bf16.mxu0 0
    %286 = vmatpush1.bf16.msra.mxu0 0
    %287 = vmatprep.subr.bf16.mxu0 0
    %288 = vmatpush1.bf16.msra.mxu0 0
    %289 = vmatprep.subr.bf16.mxu0 0
    %290 = vmatpush1.bf16.msra.mxu0 0
    %291 = vmatprep.subr.bf16.mxu0 0
    %292 = vmatpush1.bf16.msra.mxu0 0
    %293 = vmatprep.subr.bf16.mxu0 0
    %294 = vmatpush1.bf16.msra.mxu0 0
    %295 = vmatprep.subr.bf16.mxu0 0
    %296 = vmatpush1.bf16.msra.mxu0 0
    %297 = vmatprep.subr.bf16.mxu0 0
    %298 = vmatpush1.bf16.msra.mxu0 0
    %299 = vmatprep.subr.bf16.mxu0 0
    %300 = vmatpush1.bf16.msra.mxu0 0
    %301 = vmatprep.mubr.bf16.mxu0 0
    %302 = vmatmul.mubr.bf16.gmra.mrb[0].mxu0 %v267
    %v303 = vpop.f32.mrb[0].mxu0
    %v304 = vadd.f32 0.0, %v303
    %v305 = vpop.f32.mrb[0].mxu0
    %v306 = vpop.f32.mrb[0].mxu0
    %v307 = vpop.f32.mrb[0].mxu0
    %308 = vdwg.mxu0
    %v309 = vadd.f32 %v181, %v304
    %v310 = vxor.u32 %v309, 2147483648
    %v311 = vmul.f32 %v310, 1.442695
    %v312 = vpow.pop %v311
    %v313 = vadd.f32 %v312, 1.0
    %v314 = vrcp.pop %v313
    %v315 = vmul.f32 1.0, %v314
    %v316 = vtanh.pop %v309
    %318 = vrot.lane.b32.xlu0 %v242, 32
    %v319 = vpop.permute.xlu0 %318
    %v321 = vmul.f32 %v315, %v319
    %323 = vrot.lane.b32.xlu0 %v316, 64
    %v324 = vpop.permute.xlu0 %323
    %v326 = vmul.f32 %v315, %v324
    %328 = vrot.lane.b32.xlu0 %v326, 32
    %v329 = vpop.permute.xlu0 %328
    %v331 = vadd.f32 %v321, %v329
    %v332 = vtanh.pop %v331
    %334 = vrot.lane.b32.xlu0 %v332, 64
    %v335 = vpop.permute.xlu0 %334
    %v337 = vmul.f32 %v315, %v335
    %v338 = vpack.c.bf16 %v337, %v337
    %340 = vrot.lane.b32.xlu0 %v338, 32
    %v341 = vpop.permute.xlu0 %340
    %v343 = vsel %vm265, %v341, 0
    %345 = vmatprep.subr.bf16.mxu0 0
    %346 = vmatpush1.bf16.msra.mxu0 %v261
    %347 = vmatprep.subr.bf16.mxu0 0
    %348 = vmatpush1.bf16.msra.mxu0 %v262
    %349 = vmatprep.subr.bf16.mxu0 0
    %350 = vmatpush1.bf16.msra.mxu0 0
    %351 = vmatprep.subr.bf16.mxu0 0
    %352 = vmatpush1.bf16.msra.mxu0 0
    %353 = vmatprep.subr.bf16.mxu0 0
    %354 = vmatpush1.bf16.msra.mxu0 0
    %355 = vmatprep.subr.bf16.mxu0 0
    %356 = vmatpush1.bf16.msra.mxu0 0
    %357 = vmatprep.subr.bf16.mxu0 0
    %358 = vmatpush1.bf16.msra.mxu0 0
    %359 = vmatprep.subr.bf16.mxu0 0
    %360 = vmatpush1.bf16.msra.mxu0 0
    %361 = vmatprep.subr.bf16.mxu0 0
    %362 = vmatpush1.bf16.msra.mxu0 0
    %363 = vmatprep.subr.bf16.mxu0 0
    %364 = vmatpush1.bf16.msra.mxu0 0
    %365 = vmatprep.subr.bf16.mxu0 0
    %366 = vmatpush1.bf16.msra.mxu0 0
    %367 = vmatprep.subr.bf16.mxu0 0
    %368 = vmatpush1.bf16.msra.mxu0 0
    %369 = vmatprep.subr.bf16.mxu0 0
    %370 = vmatpush1.bf16.msra.mxu0 0
    %371 = vmatprep.subr.bf16.mxu0 0
    %372 = vmatpush1.bf16.msra.mxu0 0
    %373 = vmatprep.subr.bf16.mxu0 0
    %374 = vmatpush1.bf16.msra.mxu0 0
    %375 = vmatprep.subr.bf16.mxu0 0
    %376 = vmatpush1.bf16.msra.mxu0 0
    %377 = vmatprep.mubr.bf16.mxu0 0
    %378 = vmatmul.mubr.bf16.gmra.mrb[0].mxu0 %v343
    %v379 = vpop.f32.mrb[0].mxu0
    %v380 = vadd.f32 0.0, %v379
    %v381 = vpop.f32.mrb[0].mxu0
    %v382 = vpop.f32.mrb[0].mxu0
    %v383 = vpop.f32.mrb[0].mxu0
    %384 = vdwg.mxu0
    %v385 = vadd.f32 %v186, %v380
    %v386 = vxor.u32 %v385, 2147483648
    %v387 = vmul.f32 %v386, 1.442695
    %v388 = vpow.pop %v387
    %v389 = vadd.f32 %v388, 1.0
    %v390 = vrcp.pop %v389
    %v391 = vmul.f32 1.0, %v390
    %v392 = vtanh.pop %v385
    %v393 = vmul.f32 %v391, %v331
    %395 = vrot.lane.b32.xlu0 %v392, 64
    %v396 = vpop.permute.xlu0 %395
    %v398 = vmul.f32 %v391, %v396
    %400 = vrot.lane.b32.xlu0 %v398, 32
    %v401 = vpop.permute.xlu0 %400
    %v403 = vadd.f32 %v393, %v401
    %v404 = vtanh.pop %v403
    %406 = vrot.lane.b32.xlu0 %v404, 64
    %v407 = vpop.permute.xlu0 %406
    %v409 = vmul.f32 %v391, %v407
    %v410 = vpack.c.bf16 %v409, %v409
    %412 = vrot.lane.b32.xlu0 %v410, 32
    %v413 = vpop.permute.xlu0 %412
    %v415 = vsel %vm265, %v413, 0
    %417 = vmatprep.subr.bf16.mxu0 0
    %418 = vmatpush1.bf16.msra.mxu0 %v261
    %419 = vmatprep.subr.bf16.mxu0 0
    %420 = vmatpush1.bf16.msra.mxu0 %v262
    %421 = vmatprep.subr.bf16.mxu0 0
    %422 = vmatpush1.bf16.msra.mxu0 0
    %423 = vmatprep.subr.bf16.mxu0 0
    %424 = vmatpush1.bf16.msra.mxu0 0
    %425 = vmatprep.subr.bf16.mxu0 0
    %426 = vmatpush1.bf16.msra.mxu0 0
    %427 = vmatprep.subr.bf16.mxu0 0
    %428 = vmatpush1.bf16.msra.mxu0 0
    %429 = vmatprep.subr.bf16.mxu0 0
    %430 = vmatpush1.bf16.msra.mxu0 0
    %431 = vmatprep.subr.bf16.mxu0 0
    %432 = vmatpush1.bf16.msra.mxu0 0
    %433 = vmatprep.subr.bf16.mxu0 0
    %434 = vmatpush1.bf16.msra.mxu0 0
    %435 = vmatprep.subr.bf16.mxu0 0
    %436 = vmatpush1.bf16.msra.mxu0 0
    %437 = vmatprep.subr.bf16.mxu0 0
    %438 = vmatpush1.bf16.msra.mxu0 0
    %439 = vmatprep.subr.bf16.mxu0 0
    %440 = vmatpush1.bf16.msra.mxu0 0
    %441 = vmatprep.subr.bf16.mxu0 0
    %442 = vmatpush1.bf16.msra.mxu0 0
    %443 = vmatprep.subr.bf16.mxu0 0
    %444 = vmatpush1.bf16.msra.mxu0 0
    %445 = vmatprep.subr.bf16.mxu0 0
    %446 = vmatpush1.bf16.msra.mxu0 0
    %447 = vmatprep.subr.bf16.mxu0 0
    %448 = vmatpush1.bf16.msra.mxu0 0
    %449 = vmatprep.mubr.bf16.mxu0 0
    %450 = vmatmul.mubr.bf16.gmra.mrb[0].mxu0 %v415
    %v451 = vpop.f32.mrb[0].mxu0
    %v452 = vadd.f32 0.0, %v451
    %v453 = vpop.f32.mrb[0].mxu0
    %v454 = vpop.f32.mrb[0].mxu0
    %v455 = vpop.f32.mrb[0].mxu0
    %456 = vdwg.mxu0
    %v457 = vadd.f32 %v189, %v452
    %v458 = vxor.u32 %v457, 2147483648
    %v459 = vmul.f32 %v458, 1.442695
    %v460 = vpow.pop %v459
    %v461 = vadd.f32 %v460, 1.0
    %v462 = vrcp.pop %v461
    %v463 = vmul.f32 1.0, %v462
    %v464 = vtanh.pop %v457
    %v465 = vmul.f32 %v463, %v403
    %467 = vrot.lane.b32.xlu0 %v464, 64
    %v468 = vpop.permute.xlu0 %467
    %v470 = vmul.f32 %v463, %v468
    %472 = vrot.lane.b32.xlu0 %v470, 32
    %v473 = vpop.permute.xlu0 %472
    %v475 = vadd.f32 %v465, %v473
    %v476 = vtanh.pop %v475
    %478 = vrot.lane.b32.xlu0 %v476, 64
    %v479 = vpop.permute.xlu0 %478
    %v481 = vmul.f32 %v463, %v479
    %v482 = vpack.c.bf16 %v481, %v481
    %484 = vrot.lane.b32.xlu0 %v482, 32
    %v485 = vpop.permute.xlu0 %484
    %v487 = vsel %vm265, %v485, 0
    %489 = vmatprep.subr.bf16.mxu0 0
    %490 = vmatpush1.bf16.msra.mxu0 %v261
    %491 = vmatprep.subr.bf16.mxu0 0
    %492 = vmatpush1.bf16.msra.mxu0 %v262
    %493 = vmatprep.subr.bf16.mxu0 0
    %494 = vmatpush1.bf16.msra.mxu0 0
    %495 = vmatprep.subr.bf16.mxu0 0
    %496 = vmatpush1.bf16.msra.mxu0 0
    %497 = vmatprep.subr.bf16.mxu0 0
    %498 = vmatpush1.bf16.msra.mxu0 0
    %499 = vmatprep.subr.bf16.mxu0 0
    %500 = vmatpush1.bf16.msra.mxu0 0
    %501 = vmatprep.subr.bf16.mxu0 0
    %502 = vmatpush1.bf16.msra.mxu0 0
    %503 = vmatprep.subr.bf16.mxu0 0
    %504 = vmatpush1.bf16.msra.mxu0 0
    %505 = vmatprep.subr.bf16.mxu0 0
    %506 = vmatpush1.bf16.msra.mxu0 0
    %507 = vmatprep.subr.bf16.mxu0 0
    %508 = vmatpush1.bf16.msra.mxu0 0
    %509 = vmatprep.subr.bf16.mxu0 0
    %510 = vmatpush1.bf16.msra.mxu0 0
    %511 = vmatprep.subr.bf16.mxu0 0
    %512 = vmatpush1.bf16.msra.mxu0 0
    %513 = vmatprep.subr.bf16.mxu0 0
    %514 = vmatpush1.bf16.msra.mxu0 0
    %515 = vmatprep.subr.bf16.mxu0 0
    %516 = vmatpush1.bf16.msra.mxu0 0
    %517 = vmatprep.subr.bf16.mxu0 0
    %518 = vmatpush1.bf16.msra.mxu0 0
    %519 = vmatprep.subr.bf16.mxu0 0
    %520 = vmatpush1.bf16.msra.mxu0 0
    %521 = vmatprep.mubr.bf16.mxu0 0
    %522 = vmatmul.mubr.bf16.gmra.mrb[0].mxu0 %v487
    %v523 = vpop.f32.mrb[0].mxu0
    %v524 = vadd.f32 0.0, %v523
    %v525 = vpop.f32.mrb[0].mxu0
    %v526 = vpop.f32.mrb[0].mxu0
    %v527 = vpop.f32.mrb[0].mxu0
    %528 = vdwg.mxu0
    %v529 = vadd.f32 %v194, %v524
    %v530 = vxor.u32 %v529, 2147483648
    %v531 = vmul.f32 %v530, 1.442695
    %v532 = vpow.pop %v531
    %v533 = vadd.f32 %v532, 1.0
    %v534 = vrcp.pop %v533
    %v535 = vmul.f32 1.0, %v534
    %v536 = vtanh.pop %v529
    %v537 = vmul.f32 %v535, %v475
    %539 = vrot.lane.b32.xlu0 %v536, 64
    %v540 = vpop.permute.xlu0 %539
    %v542 = vmul.f32 %v535, %v540
    %544 = vrot.lane.b32.xlu0 %v542, 32
    %v545 = vpop.permute.xlu0 %544
    %v547 = vadd.f32 %v537, %v545
    %v548 = vtanh.pop %v547
    %550 = vrot.lane.b32.xlu0 %v548, 64
    %v551 = vpop.permute.xlu0 %550
    %v553 = vmul.f32 %v535, %v551
    %v554 = vpack.c.bf16 %v553, %v553
    %556 = vrot.lane.b32.xlu0 %v554, 32
    %v557 = vpop.permute.xlu0 %556
    %v559 = vsel %vm265, %v557, 0
    %561 = vmatprep.subr.bf16.mxu0 0
    %562 = vmatpush1.bf16.msra.mxu0 %v261
    %563 = vmatprep.subr.bf16.mxu0 0
    %564 = vmatpush1.bf16.msra.mxu0 %v262
    %565 = vmatprep.subr.bf16.mxu0 0
    %566 = vmatpush1.bf16.msra.mxu0 0
    %567 = vmatprep.subr.bf16.mxu0 0
    %568 = vmatpush1.bf16.msra.mxu0 0
    %569 = vmatprep.subr.bf16.mxu0 0
    %570 = vmatpush1.bf16.msra.mxu0 0
    %571 = vmatprep.subr.bf16.mxu0 0
    %572 = vmatpush1.bf16.msra.mxu0 0
    %573 = vmatprep.subr.bf16.mxu0 0
    %574 = vmatpush1.bf16.msra.mxu0 0
    %575 = vmatprep.subr.bf16.mxu0 0
    %576 = vmatpush1.bf16.msra.mxu0 0
    %577 = vmatprep.subr.bf16.mxu0 0
    %578 = vmatpush1.bf16.msra.mxu0 0
    %579 = vmatprep.subr.bf16.mxu0 0
    %580 = vmatpush1.bf16.msra.mxu0 0
    %581 = vmatprep.subr.bf16.mxu0 0
    %582 = vmatpush1.bf16.msra.mxu0 0
    %583 = vmatprep.subr.bf16.mxu0 0
    %584 = vmatpush1.bf16.msra.mxu0 0
    %585 = vmatprep.subr.bf16.mxu0 0
    %586 = vmatpush1.bf16.msra.mxu0 0
    %587 = vmatprep.subr.bf16.mxu0 0
    %588 = vmatpush1.bf16.msra.mxu0 0
    %589 = vmatprep.subr.bf16.mxu0 0
    %590 = vmatpush1.bf16.msra.mxu0 0
    %591 = vmatprep.subr.bf16.mxu0 0
    %592 = vmatpush1.bf16.msra.mxu0 0
    %593 = vmatprep.mubr.bf16.mxu0 0
    %594 = vmatmul.mubr.bf16.gmra.mrb[0].mxu0 %v559
    %v595 = vpop.f32.mrb[0].mxu0
    %v596 = vadd.f32 0.0, %v595
    %v597 = vpop.f32.mrb[0].mxu0
    %v598 = vpop.f32.mrb[0].mxu0
    %v599 = vpop.f32.mrb[0].mxu0
    %600 = vdwg.mxu0
    %v601 = vadd.f32 %v197, %v596
    %v602 = vxor.u32 %v601, 2147483648
    %v603 = vmul.f32 %v602, 1.442695
    %v604 = vpow.pop %v603
    %v605 = vadd.f32 %v604, 1.0
    %v606 = vrcp.pop %v605
    %v607 = vmul.f32 1.0, %v606
    %v608 = vtanh.pop %v601
    %v609 = vmul.f32 %v607, %v547
    %611 = vrot.lane.b32.xlu0 %v608, 64
    %v612 = vpop.permute.xlu0 %611
    %v614 = vmul.f32 %v607, %v612
    %616 = vrot.lane.b32.xlu0 %v614, 32
    %v617 = vpop.permute.xlu0 %616
    %v619 = vadd.f32 %v609, %v617
    %v620 = vtanh.pop %v619
    %622 = vrot.lane.b32.xlu0 %v620, 64
    %v623 = vpop.permute.xlu0 %622
    %v625 = vmul.f32 %v607, %v623
    %v626 = vpack.c.bf16 %v625, %v625
    %628 = vrot.lane.b32.xlu0 %v626, 32
    %v629 = vpop.permute.xlu0 %628
    %v631 = vsel %vm265, %v629, 0
    %633 = vmatprep.subr.bf16.mxu0 0
    %634 = vmatpush1.bf16.msra.mxu0 %v261
    %635 = vmatprep.subr.bf16.mxu0 0
    %636 = vmatpush1.bf16.msra.mxu0 %v262
    %637 = vmatprep.subr.bf16.mxu0 0
    %638 = vmatpush1.bf16.msra.mxu0 0
    %639 = vmatprep.subr.bf16.mxu0 0
    %640 = vmatpush1.bf16.msra.mxu0 0
    %641 = vmatprep.subr.bf16.mxu0 0
    %642 = vmatpush1.bf16.msra.mxu0 0
    %643 = vmatprep.subr.bf16.mxu0 0
    %644 = vmatpush1.bf16.msra.mxu0 0
    %645 = vmatprep.subr.bf16.mxu0 0
    %646 = vmatpush1.bf16.msra.mxu0 0
    %647 = vmatprep.subr.bf16.mxu0 0
    %648 = vmatpush1.bf16.msra.mxu0 0
    %649 = vmatprep.subr.bf16.mxu0 0
    %650 = vmatpush1.bf16.msra.mxu0 0
    %651 = vmatprep.subr.bf16.mxu0 0
    %652 = vmatpush1.bf16.msra.mxu0 0
    %653 = vmatprep.subr.bf16.mxu0 0
    %654 = vmatpush1.bf16.msra.mxu0 0
    %655 = vmatprep.subr.bf16.mxu0 0
    %656 = vmatpush1.bf16.msra.mxu0 0
    %657 = vmatprep.subr.bf16.mxu0 0
    %658 = vmatpush1.bf16.msra.mxu0 0
    %659 = vmatprep.subr.bf16.mxu0 0
    %660 = vmatpush1.bf16.msra.mxu0 0
    %661 = vmatprep.subr.bf16.mxu0 0
    %662 = vmatpush1.bf16.msra.mxu0 0
    %663 = vmatprep.subr.bf16.mxu0 0
    %664 = vmatpush1.bf16.msra.mxu0 0
    %665 = vmatprep.mubr.bf16.mxu0 0
    %666 = vmatmul.mubr.bf16.gmra.mrb[0].mxu0 %v631
    %v667 = vpop.f32.mrb[0].mxu0
    %v668 = vadd.f32 0.0, %v667
    %v669 = vpop.f32.mrb[0].mxu0
    %v670 = vpop.f32.mrb[0].mxu0
    %v671 = vpop.f32.mrb[0].mxu0
    %672 = vdwg.mxu0
    %v673 = vadd.f32 %v202, %v668
    %v674 = vxor.u32 %v673, 2147483648
    %v675 = vmul.f32 %v674, 1.442695
    %v676 = vpow.pop %v675
    %v677 = vadd.f32 %v676, 1.0
    %v678 = vrcp.pop %v677
    %v679 = vmul.f32 1.0, %v678
    %v680 = vtanh.pop %v673
    %v681 = vmul.f32 %v679, %v619
    %683 = vrot.lane.b32.xlu0 %v680, 64
    %v684 = vpop.permute.xlu0 %683
    %v686 = vmul.f32 %v679, %v684
    %688 = vrot.lane.b32.xlu0 %v686, 32
    %v689 = vpop.permute.xlu0 %688
    %v691 = vadd.f32 %v681, %v689
    %v692 = vtanh.pop %v691
    %694 = vrot.lane.b32.xlu0 %v692, 64
    %v695 = vpop.permute.xlu0 %694
    %v697 = vmul.f32 %v679, %v695
    %v698 = vpack.c.bf16 %v697, %v697
    %700 = vrot.lane.b32.xlu0 %v698, 32
    %v701 = vpop.permute.xlu0 %700
    %v703 = vsel %vm265, %v701, 0
    %705 = vmatprep.subr.bf16.mxu0 0
    %706 = vmatpush1.bf16.msra.mxu0 %v261
    %707 = vmatprep.subr.bf16.mxu0 0
    %708 = vmatpush1.bf16.msra.mxu0 %v262
    %709 = vmatprep.subr.bf16.mxu0 0
    %710 = vmatpush1.bf16.msra.mxu0 0
    %711 = vmatprep.subr.bf16.mxu0 0
    %712 = vmatpush1.bf16.msra.mxu0 0
    %713 = vmatprep.subr.bf16.mxu0 0
    %714 = vmatpush1.bf16.msra.mxu0 0
    %715 = vmatprep.subr.bf16.mxu0 0
    %716 = vmatpush1.bf16.msra.mxu0 0
    %717 = vmatprep.subr.bf16.mxu0 0
    %718 = vmatpush1.bf16.msra.mxu0 0
    %719 = vmatprep.subr.bf16.mxu0 0
    %720 = vmatpush1.bf16.msra.mxu0 0
    %721 = vmatprep.subr.bf16.mxu0 0
    %722 = vmatpush1.bf16.msra.mxu0 0
    %723 = vmatprep.subr.bf16.mxu0 0
    %724 = vmatpush1.bf16.msra.mxu0 0
    %725 = vmatprep.subr.bf16.mxu0 0
    %726 = vmatpush1.bf16.msra.mxu0 0
    %727 = vmatprep.subr.bf16.mxu0 0
    %728 = vmatpush1.bf16.msra.mxu0 0
    %729 = vmatprep.subr.bf16.mxu0 0
    %730 = vmatpush1.bf16.msra.mxu0 0
    %731 = vmatprep.subr.bf16.mxu0 0
    %732 = vmatpush1.bf16.msra.mxu0 0
    %733 = vmatprep.subr.bf16.mxu0 0
    %734 = vmatpush1.bf16.msra.mxu0 0
    %735 = vmatprep.subr.bf16.mxu0 0
    %736 = vmatpush1.bf16.msra.mxu0 0
    %737 = vmatprep.mubr.bf16.mxu0 0
    %738 = vmatmul.mubr.bf16.gmra.mrb[0].mxu0 %v703
    %v739 = vpop.f32.mrb[0].mxu0
    %v740 = vadd.f32 0.0, %v739
    %v741 = vpop.f32.mrb[0].mxu0
    %v742 = vpop.f32.mrb[0].mxu0
    %v743 = vpop.f32.mrb[0].mxu0
    %744 = vdwg.mxu0
    %v745 = vadd.f32 %v205, %v740
    %v746 = vxor.u32 %v745, 2147483648
    %v747 = vmul.f32 %v746, 1.442695
    %v748 = vpow.pop %v747
    %v749 = vadd.f32 %v748, 1.0
    %v750 = vrcp.pop %v749
    %v751 = vmul.f32 1.0, %v750
    %v752 = vtanh.pop %v745
    %v753 = vmul.f32 %v751, %v691
    %755 = vrot.lane.b32.xlu0 %v752, 64
    %v756 = vpop.permute.xlu0 %755
    %v758 = vmul.f32 %v751, %v756
    %760 = vrot.lane.b32.xlu0 %v758, 32
    %v761 = vpop.permute.xlu0 %760
    %v763 = vadd.f32 %v753, %v761
    %v764 = vtanh.pop %v763
    %766 = vrot.lane.b32.xlu0 %v764, 64
    %v767 = vpop.permute.xlu0 %766
    %v769 = vmul.f32 %v751, %v767
    %v770 = vpack.c.bf16 %v769, %v769
    %v771 = vld [vmem:[%s4] sm:$0xf]
    %v772 = vld [vmem:[%s4 + $0x4] sm:$0xf]
    %v773 = vld [vmem:[%s4 + $0x8] sm:$0xf]
    %v774 = vld [vmem:[%s4 + $0xc] sm:$0xf]
    %v775 = vpack.c.bf16 %v226, %v226
    %v776 = vld [vmem:[%s5] sm:$0xf]
    %v777 = vld [vmem:[%s5 + $0x4] sm:$0xf]
    %v778 = vld [vmem:[%s5 + $0x8] sm:$0xf]
    %v779 = vld [vmem:[%s5 + $0xc] sm:$0xf]
    %781 = vrot.lane.b32.xlu0 %v775, 32
    %v782 = vpop.permute.xlu0 %781
    %v787 = vunpack.c.l.b16 %v776
    %v788 = vunpack.c.l.b16 %v777
    %v789 = vunpack.c.l.b16 %v778
    %v790 = vunpack.c.l.b16 %v779
    %v791 = vpack.c.b16 %v788, %v787
    %v792 = vpack.c.b16 %v790, %v789
    %v796 = vsel %vm265, %v782, 0
    %798 = vmatprep.subr.bf16.mxu0 0
    %799 = vmatpush1.bf16.msra.mxu0 %v791
    %800 = vmatprep.subr.bf16.mxu0 0
    %801 = vmatpush1.bf16.msra.mxu0 %v792
    %802 = vmatprep.subr.bf16.mxu0 0
    %803 = vmatpush1.bf16.msra.mxu0 0
    %804 = vmatprep.subr.bf16.mxu0 0
    %805 = vmatpush1.bf16.msra.mxu0 0
    %806 = vmatprep.subr.bf16.mxu0 0
    %807 = vmatpush1.bf16.msra.mxu0 0
    %808 = vmatprep.subr.bf16.mxu0 0
    %809 = vmatpush1.bf16.msra.mxu0 0
    %810 = vmatprep.subr.bf16.mxu0 0
    %811 = vmatpush1.bf16.msra.mxu0 0
    %812 = vmatprep.subr.bf16.mxu0 0
    %813 = vmatpush1.bf16.msra.mxu0 0
    %814 = vmatprep.subr.bf16.mxu0 0
    %815 = vmatpush1.bf16.msra.mxu0 0
    %816 = vmatprep.subr.bf16.mxu0 0
    %817 = vmatpush1.bf16.msra.mxu0 0
    %818 = vmatprep.subr.bf16.mxu0 0
    %819 = vmatpush1.bf16.msra.mxu0 0
    %820 = vmatprep.subr.bf16.mxu0 0
    %821 = vmatpush1.bf16.msra.mxu0 0
    %822 = vmatprep.subr.bf16.mxu0 0
    %823 = vmatpush1.bf16.msra.mxu0 0
    %824 = vmatprep.subr.bf16.mxu0 0
    %825 = vmatpush1.bf16.msra.mxu0 0
    %826 = vmatprep.subr.bf16.mxu0 0
    %827 = vmatpush1.bf16.msra.mxu0 0
    %828 = vmatprep.subr.bf16.mxu0 0
    %829 = vmatpush1.bf16.msra.mxu0 0
    %830 = vmatprep.mubr.bf16.mxu0 0
    %831 = vmatmul.mubr.bf16.gmra.mrb[0].mxu0 %v796
    %v832 = vpop.f32.mrb[0].mxu0
    %v833 = vadd.f32 0.0, %v832
    %v834 = vpop.f32.mrb[0].mxu0
    %v835 = vpop.f32.mrb[0].mxu0
    %v836 = vpop.f32.mrb[0].mxu0
    %837 = vdwg.mxu0
    %839 = vrot.lane.b32.xlu0 %v770, 32
    %v840 = vpop.permute.xlu0 %839
    %v845 = vunpack.c.l.b16 %v771
    %v846 = vunpack.c.l.b16 %v772
    %v847 = vunpack.c.l.b16 %v773
    %v848 = vunpack.c.l.b16 %v774
    %v849 = vpack.c.b16 %v846, %v845
    %v850 = vpack.c.b16 %v848, %v847
    %v854 = vsel %vm265, %v840, 0
    %856 = vmatprep.subr.bf16.mxu0 0
    %857 = vmatpush1.bf16.msra.mxu0 %v849
    %858 = vmatprep.subr.bf16.mxu0 0
    %859 = vmatpush1.bf16.msra.mxu0 %v850
    %860 = vmatprep.subr.bf16.mxu0 0
    %861 = vmatpush1.bf16.msra.mxu0 0
    %862 = vmatprep.subr.bf16.mxu0 0
    %863 = vmatpush1.bf16.msra.mxu0 0
    %864 = vmatprep.subr.bf16.mxu0 0
    %865 = vmatpush1.bf16.msra.mxu0 0
    %866 = vmatprep.subr.bf16.mxu0 0
    %867 = vmatpush1.bf16.msra.mxu0 0
    %868 = vmatprep.subr.bf16.mxu0 0
    %869 = vmatpush1.bf16.msra.mxu0 0
    %870 = vmatprep.subr.bf16.mxu0 0
    %871 = vmatpush1.bf16.msra.mxu0 0
    %872 = vmatprep.subr.bf16.mxu0 0
    %873 = vmatpush1.bf16.msra.mxu0 0
    %874 = vmatprep.subr.bf16.mxu0 0
    %875 = vmatpush1.bf16.msra.mxu0 0
    %876 = vmatprep.subr.bf16.mxu0 0
    %877 = vmatpush1.bf16.msra.mxu0 0
    %878 = vmatprep.subr.bf16.mxu0 0
    %879 = vmatpush1.bf16.msra.mxu0 0
    %880 = vmatprep.subr.bf16.mxu0 0
    %881 = vmatpush1.bf16.msra.mxu0 0
    %882 = vmatprep.subr.bf16.mxu0 0
    %883 = vmatpush1.bf16.msra.mxu0 0
    %884 = vmatprep.subr.bf16.mxu0 0
    %885 = vmatpush1.bf16.msra.mxu0 0
    %886 = vmatprep.subr.bf16.mxu0 0
    %887 = vmatpush1.bf16.msra.mxu0 0
    %888 = vmatprep.mubr.bf16.mxu0 0
    %889 = vmatmul.mubr.bf16.gmra.mrb[0].mxu0 %v854
    %v890 = vpop.f32.mrb[0].mxu0
    %v891 = vadd.f32 %v833, %v890
    %v892 = vpop.f32.mrb[0].mxu0
    %v893 = vpop.f32.mrb[0].mxu0
    %v894 = vpop.f32.mrb[0].mxu0
    %895 = vdwg.mxu0
    %v896 = vld [vmem:[%s6] sm:$0x1]
    %v898 = vlaneseq
    %v899 = vshrl.u32 %v898, 7
    %v900 = vsub.s32 0, %v899
    %v901 = vrot.slane %v896, %v900
    %v903 = vadd.f32 %v891, %v901
    %vm904 = vcmask 64512
    %v905 = vsel %vm904, %v903, -inf
    %906 = vmax.xlane.f32.xlu0 %v905
    %v907 = vpop.xlane.xlu0 %906
    %v908 = vsub.f32 %v903, %v907
    %v909 = vmul.f32 %v908, 1.442695
    %v910 = vpow.pop %v909
    %v911 = vsel %vm904, %v910, 0.0
    %912 = vadd.xlane.f32.xlu0 %v911
    %v913 = vpop.xlane.xlu0 %912
    %v914 = vlog2.pop %v913
    %v915 = vmul.f32 %v914, 0.6931472
    %v916 = vsub.f32 %v908, %v915
    %917 = vst.msk [vmem:[#allocation5] sm:$0xff] %vm904, %v916
    // Predicated region
    $region34: #{tpu_custom_call.1} parent=1 // pred_check
      _
    $region35: #{tpu_custom_call.1} parent=1 // pred_check_branch
      %919 = sbr.rel (0) target = $region37
    $region36: #{tpu_custom_call.1} parent=1 // pred_region
      %s921 = ssub.s32 128, 128
      %922 = vsyncadd [#allocation4], %s921
      %s924 = sshll.u32 [#allocation5], 4
      %s925 = int_to_ptr.vmem [resolvable:$true] %s924
      %927 = dma.vmem_to_hbm [thread:$0]  %s925, 128, %s7, [#allocation4]
    $region37: #{tpu_custom_call.1} parent=1 // pred_fallthru
      _
    // Predicated region
    $region38: #{tpu_custom_call.1} parent=1 // pred_check
      _
    $region39: #{tpu_custom_call.1} parent=1 // pred_check_branch
      %929 = sbr.rel (0) target = $region41
    $region40: #{tpu_custom_call.1} parent=1 // pred_region
      %930 = dma.done [#allocation4], 128
    $region41: #{tpu_custom_call.1} parent=1 // pred_fallthru
      _
    %931 = vsyncpa [#allocation3], 1
    %932 = vsyncpa [#allocation4], 1

</llo_original>
